<compile_context>
chip_gen: v7x
topology: tpu7x:2x2x1
jax: 0.10.0
libtpu: 0.0.40
codegen_flags: <defaults>
</compile_context>

<pallas_src>
import functools

import jax
import jax.numpy as jnp
from jax.experimental import pallas as pl
from jax.experimental.pallas import tpu as pltpu

# ----------------------------- model config ---------------------------------
N_SINGLE = 4            # identity, square, tanh, sigmoid
N_DOUBLE = 1            # product
N_FUNCS = N_SINGLE + N_DOUBLE            # layer output width (5)
LAYER_OUT_DIM = N_FUNCS + N_DOUBLE       # pre-activation width (6)
IN_DIM = 14             # matches the 14 features built by meta_update / build_fea
DEPTH = 2
FINAL_OUT = 1           # output_weight: (n_funcs, 1)

# hard-concrete (L0) hyper-params from SymbolicLayerL0.__init__
BETA, GAMMA, ZETA, EPSILON = 2.0 / 3.0, -0.1, 1.1, 1e-6
DROPRATE_INIT = 0.5
INIT_STDDEV = 0.1

_MAX_BLOCK_B = 32768          # ~6.3 MiB double-buffered f32 VMEM -> fits v7x 64 MiB easily
_ROW_STRIDE = 8               # 8-aligned row sections inside the packed weight slab


def _round_up(v, m):
    return ((v + m - 1) // m) * m


def _choose_block_b(B, min_blocks=2):
    """Adaptive lane-tile: big enough to amortize per-step overhead, but keep
    >= min_blocks grid steps so v7x's two TensorCores both get a block."""
    per_core = -(-B // min_blocks)                 # ceil(B / min_blocks)
    per_core = _round_up(per_core, 128)            # lane dim multiple of 128
    return max(128, min(_MAX_BLOCK_B, per_core))


# ------------------------------- kernel --------------------------------------
def _apply_funcs_t(g):
    """Apply symbolic activation units in the transposed layout.

    g: (LAYER_OUT_DIM, bt) pre-activations (feature rows on sublanes, batch on
    lanes) -> (N_FUNCS, bt) activations.  Everything is computed on the full
    tile (same per-vreg cost) and combined with a sublane-iota select; the
    double-input product uses two lane-dense row slices.
    """
    rows = jax.lax.broadcasted_iota(jnp.int32, g.shape, 0)
    prod_row = g[N_SINGLE:N_SINGLE + 1, :] * g[N_SINGLE + 1:N_SINGLE + 2, :]  # (1, bt)

    h = g                                              # row 0: identity
    h = jnp.where(rows == 1, g * g, h)                 # row 1: square
    h = jnp.where(rows == 2, jnp.tanh(g), h)           # row 2: tanh    (EUP)
    h = jnp.where(rows == 3, jax.nn.sigmoid(g), h)     # row 3: sigmoid (EUP)
    h = jnp.where(rows == 4, prod_row, h)              # row 4: product of rows 4,5
    return h[:N_FUNCS, :]


def _attack_kernel(depth, layer_in_dims, n_funcs, x_ref, w_ref, o_ref):
    """x_ref: (IN_DIM, bt); w_ref: packed weight slab; o_ref: (FINAL_OUT, bt)."""
    h = x_ref[...]
    if h.dtype != jnp.float32:
        h = h.astype(jnp.float32)
    for d in range(depth):
        w_t = w_ref[d * _ROW_STRIDE:d * _ROW_STRIDE + LAYER_OUT_DIM,
                    :layer_in_dims[d]]                       # (6, in_dim_d)
        g = jnp.dot(w_t, h, preferred_element_type=jnp.float32)   # (6, bt)
        h = _apply_funcs_t(g)                                # (N_FUNCS, bt)
    # Final projection (final_out == 1): a 5-term weighted sum -> VPU broadcast-mul
    # + sublane reduce (XLU) instead of a <1%-utilization MXU dot.
    wout_col = w_ref[depth * _ROW_STRIDE:depth * _ROW_STRIDE + n_funcs, 0:1]  # (N_FUNCS, 1)
    o_ref[...] = jnp.sum(wout_col * h, axis=0, keepdims=True).astype(o_ref.dtype)


def attack_forward(x, layer_weights_eff, output_weight, *, block_b=None,
                   x_is_transposed=False):
    """Pallas forward.

    x: (B, IN_DIM) or, if x_is_transposed=True, (IN_DIM, B) feature-major (preferred,
    avoids an extra HBM transpose pass).  Returns (B, FINAL_OUT).
    """
    # TODO(synk): upstream build_fea should emit features feature-major (IN_DIM, B) so
    # the x_is_transposed=True path is always taken and no wrapper transpose is needed.
    x_t = x if x_is_transposed else x.T
    if x_t.dtype != jnp.float32:
        x_t = x_t.astype(jnp.float32)
    in_dim, B = x_t.shape

    depth = len(layer_weights_eff)
    layer_in_dims = tuple(int(w.shape[0]) for w in layer_weights_eff)
    n_funcs = int(output_weight.shape[0])
    final_out = int(output_weight.shape[1])
    assert final_out == 1, "kernel's VPU final projection assumes a single output column"

    if block_b is None:
        block_b = _choose_block_b(B)
    n_blocks = pl.cdiv(B, block_b)          # ragged tail handled by Pallas edge blocks

    # Pack all (tiny) weights into one resident slab: 8-aligned row sections.
    #   rows [d*8 : d*8+6]          = layer d weight, transposed: (out_dim, in_dim_d)
    #   rows [depth*8 : depth*8+5]  = output_weight as a column:  (n_funcs, 1)
    n_slab_rows = depth * _ROW_STRIDE + _round_up(n_funcs, _ROW_STRIDE)
    n_slab_cols = max(max(layer_in_dims), final_out)
    slab = jnp.zeros((n_slab_rows, n_slab_cols), jnp.float32)
    for d, w in enumerate(layer_weights_eff):
        w_t = w.T.astype(jnp.float32)                        # (out_dim, in_dim_d)
        slab = slab.at[d * _ROW_STRIDE:d * _ROW_STRIDE + w_t.shape[0],
                       :w_t.shape[1]].set(w_t)
    slab = slab.at[depth * _ROW_STRIDE:depth * _ROW_STRIDE + n_funcs,
                   :final_out].set(output_weight.astype(jnp.float32))

    in_specs = [
        pl.BlockSpec((in_dim, block_b), lambda i: (0, i)),   # batch on lanes
        pl.BlockSpec(slab.shape, lambda i: (0, 0)),          # tiny resident weight slab
    ]
    out_spec = pl.BlockSpec((final_out, block_b), lambda i: (0, i))  # lane-dense output

    # VMEM budget: double-buffered x tile + out tile + weight slab, plus slack.
    vmem_limit = int(min(
        64 << 20,
        max(4 << 20,
            2 * (_round_up(in_dim, 8) + _round_up(final_out, 8)) * block_b * 4
            + 2 * _round_up(n_slab_rows, 8) * _round_up(n_slab_cols, 128) * 4
            + (1 << 20))))

    # Advisory cost estimate (memory-bound op).
    flops = 2 * B * n_funcs * final_out
    for w in layer_weights_eff:
        flops += 2 * B * w.shape[0] * w.shape[1]
    transcendentals = 2 * depth * LAYER_OUT_DIM * B
    bytes_accessed = 4 * (B * (in_dim + final_out) + slab.size)

    kernel = functools.partial(_attack_kernel, depth, layer_in_dims, n_funcs)
    out_t = pl.pallas_call(
        kernel,
        out_shape=jax.ShapeDtypeStruct((final_out, B), jnp.float32),
        grid_spec=pltpu.PrefetchScalarGridSpec(
            num_scalar_prefetch=0,
            grid=(n_blocks,),
            in_specs=in_specs,
            out_specs=out_spec,
        ),
        compiler_params=pltpu.CompilerParams(
            dimension_semantics=("parallel",),
            vmem_limit_bytes=vmem_limit,
        ),
        cost_estimate=pl.CostEstimate(
            flops=int(flops),
            transcendentals=int(transcendentals),
            bytes_accessed=int(bytes_accessed),
        ),
    )(x_t, slab)

    return out_t.T                                            # (B, final_out)


# ------------------------- parameter setup (glue) -----------------------------
def sample_effective_weight(W, qz_log_alpha, key):
    """SymbolicLayerL0.sample_weights: hard-concrete mask * W (elementwise glue)."""
    u = jax.random.uniform(key, W.shape, dtype=jnp.float32) * (1.0 - 2.0 * EPSILON) + EPSILON
    y = jax.nn.sigmoid((jnp.log(u) - jnp.log(1.0 - u) + qz_log_alpha) / BETA)
    z = y * (ZETA - GAMMA) + GAMMA
    mask = jnp.clip(z, 0.0, 1.0)
    return mask * W


def init_params(key):
    layer_in_dim = [IN_DIM] + DEPTH * [N_FUNCS]
    weights, log_alphas = [], []
    alpha_mean = jnp.log(1.0 - DROPRATE_INIT) - jnp.log(DROPRATE_INIT)  # = 0.0
    for d in range(DEPTH):
        key, k_w, k_a = jax.random.split(key, 3)
        weights.append(INIT_STDDEV *
                       jax.random.normal(k_w, (layer_in_dim[d], LAYER_OUT_DIM), jnp.float32))
        log_alphas.append(alpha_mean +
                          0.01 * jax.random.normal(k_a, (layer_in_dim[d], LAYER_OUT_DIM),
                                                   jnp.float32))
    key, k_o = jax.random.split(key)
    output_weight = INIT_STDDEV * jax.random.normal(k_o, (N_FUNCS, FINAL_OUT), jnp.float32)
    return weights, log_alphas, output_weight, key


# ------------------------------ reference (JAX) --------------------------------
def reference_forward(x, layer_weights_eff, output_weight):
    """Independent reference mirroring the PyTorch column-wise loop structure."""
    single_fns = (lambda v: v, lambda v: v * v, jnp.tanh, jax.nn.sigmoid)
    double_fns = (lambda a, b: a * b,)
    h = x
    for w in layer_weights_eff:
        g = h @ w
        cols, in_i = [], 0
        for f in single_fns:                       # while out_i < n_single
            cols.append(f(g[:, in_i])); in_i += 1
        for f in double_fns:                       # while out_i < n_funcs
            cols.append(f(g[:, in_i], g[:, in_i + 1])); in_i += 2
        h = jnp.stack(cols, axis=1)                # torch.stack(output, dim=1)
    return h @ output_weight


# TODO(synk): meta_update/build_fea (Adam-style feature construction) is host-side
# state bookkeeping outside AttackModel.forward; only forward() is kernelized here.

if __name__ == "__main__":
    key = jax.random.PRNGKey(0)
    weights, log_alphas, output_weight, key = init_params(key)

    # sample=True path: build effective (masked) weights deterministically
    eff_weights = []
    for W, la in zip(weights, log_alphas):
        key, ku = jax.random.split(key)
        eff_weights.append(sample_effective_weight(W, la, ku))

    # Test 1: feature-major input (no wrapper transpose HBM pass); adaptive block_b
    #         keeps 2 grid steps so both v7x TensorCores get work.
    B = 1024
    key, kx = jax.random.split(key)
    x_t = jax.random.normal(kx, (IN_DIM, B), jnp.float32)
    out = jax.block_until_ready(
        attack_forward(x_t, eff_weights, output_weight, x_is_transposed=True))
    ref = reference_forward(x_t.T, eff_weights, output_weight)
    assert out.shape == (B, FINAL_OUT)
    assert jnp.allclose(out, ref, rtol=1e-5, atol=1e-5), "mismatch vs JAX reference"

    # Test 2: standard (B, IN_DIM) interface, ragged batch -> Pallas edge-block handling
    #         (no jnp.pad, output masked-stored only for valid columns).
    B2 = 300
    key, kx2 = jax.random.split(key)
    x2 = jax.random.normal(kx2, (B2, IN_DIM), jnp.float32)
    out2 = jax.block_until_ready(attack_forward(x2, eff_weights, output_weight))
    ref2 = reference_forward(x2, eff_weights, output_weight)
    assert out2.shape == (B2, FINAL_OUT)
    assert jnp.allclose(out2, ref2, rtol=1e-5, atol=1e-5), "mismatch vs JAX reference (ragged)"

    # Test 3: larger ragged batch exercising a bigger adaptive block + edge block.
    B3 = 4100
    key, kx3 = jax.random.split(key)
    x3_t = jax.random.normal(kx3, (IN_DIM, B3), jnp.float32)
    out3 = jax.block_until_ready(
        attack_forward(x3_t, eff_weights, output_weight, x_is_transposed=True))
    ref3 = reference_forward(x3_t.T, eff_weights, output_weight)
    assert out3.shape == (B3, FINAL_OUT)
    assert jnp.allclose(out3, ref3, rtol=1e-5, atol=1e-5), "mismatch vs JAX reference (large)"

    print("KERNEL_OK")
</pallas_src>

<mosaic_0001>
module attributes {stable_mosaic.version = 11 : i64} {
  func.func @_attack_kernel(%arg0: i32, %arg1: memref<14x512xf32, #tpu.memory_space<vmem>>, %arg2: memref<24x14xf32, #tpu.memory_space<vmem>>, %arg3: memref<1x512xf32, #tpu.memory_space<vmem>>) attributes {dimension_semantics = [#tpu.dimension_semantics<parallel>], iteration_bounds = array<i64: 2>, scalar_prefetch = 0 : i64, scratch_operands = 0 : i64, tpu.core_type = #tpu.core_type<tc>, window_params = [{transform_indices = @transform_0, window_bounds = array<i64: 14, 512>}, {pipeline_mode = #tpu.pipeline_mode<synchronous>, transform_indices = @transform_1, window_bounds = array<i64: 24, 14>}, {transform_indices = @transform_2, window_bounds = array<i64: 1, 512>}]} {
    %c0 = arith.constant 0 : index
    %c0_0 = arith.constant 0 : index
    %0 = vector.load %arg1[%c0, %c0_0] : memref<14x512xf32, #tpu.memory_space<vmem>>, vector<14x512xf32>
    %c0_1 = arith.constant 0 : index
    %c0_2 = arith.constant 0 : index
    %1 = vector.load %arg2[%c0_1, %c0_2] : memref<24x14xf32, #tpu.memory_space<vmem>>, vector<6x14xf32>
    %cst = arith.constant dense<0.000000e+00> : vector<6x512xf32>
    %2 = tpu.matmul %1, %0, %cst {dimension_numbers = #tpu.dot_dimension_numbers<[1], [0], [0], [1], [0, 0, 1, 1], [], []>} : vector<6x14xf32>, vector<14x512xf32>, vector<6x512xf32> -> vector<6x512xf32>
    %3 = tpu.iota {dimensions = array<i32: 0>} : vector<6x512xi32>
    %4 = vector.extract_strided_slice %2 {offsets = [4, 0], sizes = [1, 512], strides = [1, 1]} : vector<6x512xf32> to vector<1x512xf32>
    %5 = vector.extract_strided_slice %2 {offsets = [5, 0], sizes = [1, 512], strides = [1, 1]} : vector<6x512xf32> to vector<1x512xf32>
    %6 = arith.mulf %4, %5 : vector<1x512xf32>
    %c1_i32 = arith.constant 1 : i32
    %7 = vector.broadcast %c1_i32 : i32 to vector<6x512xi32>
    %8 = arith.cmpi eq, %3, %7 : vector<6x512xi32>
    %9 = arith.mulf %2, %2 : vector<6x512xf32>
    %10 = arith.select %8, %9, %2 : vector<6x512xi1>, vector<6x512xf32>
    %c2_i32 = arith.constant 2 : i32
    %11 = vector.broadcast %c2_i32 : i32 to vector<6x512xi32>
    %12 = arith.cmpi eq, %3, %11 : vector<6x512xi32>
    %13 = math.tanh %2 : vector<6x512xf32>
    %14 = arith.select %12, %13, %10 : vector<6x512xi1>, vector<6x512xf32>
    %c3_i32 = arith.constant 3 : i32
    %15 = vector.broadcast %c3_i32 : i32 to vector<6x512xi32>
    %16 = arith.cmpi eq, %3, %15 : vector<6x512xi32>
    %17 = arith.negf %2 : vector<6x512xf32>
    %18 = math.exp %17 : vector<6x512xf32>
    %cst_3 = arith.constant 1.000000e+00 : f32
    %19 = vector.broadcast %cst_3 : f32 to vector<6x512xf32>
    %20 = arith.addf %19, %18 : vector<6x512xf32>
    %21 = arith.divf %19, %20 : vector<6x512xf32>
    %22 = arith.select %16, %21, %14 : vector<6x512xi1>, vector<6x512xf32>
    %c4_i32 = arith.constant 4 : i32
    %23 = vector.broadcast %c4_i32 : i32 to vector<6x512xi32>
    %24 = arith.cmpi eq, %3, %23 : vector<6x512xi32>
    %25 = vector.shape_cast %6 : vector<1x512xf32> to vector<1x512xf32>
    %26 = vector.broadcast %25 : vector<1x512xf32> to vector<6x512xf32>
    %27 = arith.select %24, %26, %22 : vector<6x512xi1>, vector<6x512xf32>
    %28 = vector.extract_strided_slice %27 {offsets = [0, 0], sizes = [5, 512], strides = [1, 1]} : vector<6x512xf32> to vector<5x512xf32>
    %c8 = arith.constant 8 : index
    %c0_4 = arith.constant 0 : index
    %29 = vector.load %arg2[%c8, %c0_4] : memref<24x14xf32, #tpu.memory_space<vmem>>, vector<6x5xf32>
    %cst_5 = arith.constant dense<0.000000e+00> : vector<6x512xf32>
    %30 = tpu.matmul %29, %28, %cst_5 {dimension_numbers = #tpu.dot_dimension_numbers<[1], [0], [0], [1], [0, 0, 1, 1], [], []>} : vector<6x5xf32>, vector<5x512xf32>, vector<6x512xf32> -> vector<6x512xf32>
    %31 = tpu.iota {dimensions = array<i32: 0>} : vector<6x512xi32>
    %32 = vector.extract_strided_slice %30 {offsets = [4, 0], sizes = [1, 512], strides = [1, 1]} : vector<6x512xf32> to vector<1x512xf32>
    %33 = vector.extract_strided_slice %30 {offsets = [5, 0], sizes = [1, 512], strides = [1, 1]} : vector<6x512xf32> to vector<1x512xf32>
    %34 = arith.mulf %32, %33 : vector<1x512xf32>
    %c1_i32_6 = arith.constant 1 : i32
    %35 = vector.broadcast %c1_i32_6 : i32 to vector<6x512xi32>
    %36 = arith.cmpi eq, %31, %35 : vector<6x512xi32>
    %37 = arith.mulf %30, %30 : vector<6x512xf32>
    %38 = arith.select %36, %37, %30 : vector<6x512xi1>, vector<6x512xf32>
    %c2_i32_7 = arith.constant 2 : i32
    %39 = vector.broadcast %c2_i32_7 : i32 to vector<6x512xi32>
    %40 = arith.cmpi eq, %31, %39 : vector<6x512xi32>
    %41 = math.tanh %30 : vector<6x512xf32>
    %42 = arith.select %40, %41, %38 : vector<6x512xi1>, vector<6x512xf32>
    %c3_i32_8 = arith.constant 3 : i32
    %43 = vector.broadcast %c3_i32_8 : i32 to vector<6x512xi32>
    %44 = arith.cmpi eq, %31, %43 : vector<6x512xi32>
    %45 = arith.negf %30 : vector<6x512xf32>
    %46 = math.exp %45 : vector<6x512xf32>
    %cst_9 = arith.constant 1.000000e+00 : f32
    %47 = vector.broadcast %cst_9 : f32 to vector<6x512xf32>
    %48 = arith.addf %47, %46 : vector<6x512xf32>
    %49 = arith.divf %47, %48 : vector<6x512xf32>
    %50 = arith.select %44, %49, %42 : vector<6x512xi1>, vector<6x512xf32>
    %c4_i32_10 = arith.constant 4 : i32
    %51 = vector.broadcast %c4_i32_10 : i32 to vector<6x512xi32>
    %52 = arith.cmpi eq, %31, %51 : vector<6x512xi32>
    %53 = vector.shape_cast %34 : vector<1x512xf32> to vector<1x512xf32>
    %54 = vector.broadcast %53 : vector<1x512xf32> to vector<6x512xf32>
    %55 = arith.select %52, %54, %50 : vector<6x512xi1>, vector<6x512xf32>
    %56 = vector.extract_strided_slice %55 {offsets = [0, 0], sizes = [5, 512], strides = [1, 1]} : vector<6x512xf32> to vector<5x512xf32>
    %c16 = arith.constant 16 : index
    %c0_11 = arith.constant 0 : index
    %57 = vector.load %arg2[%c16, %c0_11] : memref<24x14xf32, #tpu.memory_space<vmem>>, vector<5x1xf32>
    %58 = vector.broadcast %57 : vector<5x1xf32> to vector<5x512xf32>
    %59 = arith.mulf %58, %56 : vector<5x512xf32>
    %cst_12 = arith.constant dense<0.000000e+00> : vector<512xf32>
    %60 = vector.multi_reduction <add>, %59, %cst_12 [0] : vector<5x512xf32> to vector<512xf32>
    %61 = vector.shape_cast %60 : vector<512xf32> to vector<1x512xf32>
    %c0_13 = arith.constant 0 : index
    %c0_14 = arith.constant 0 : index
    %62 = vector.load %arg3[%c0_13, %c0_14] : memref<1x512xf32, #tpu.memory_space<vmem>>, vector<1x512xf32>
    tpu.vector_store %arg3[%c0_13, %c0_14], %61 {strides = array<i32>} : memref<1x512xf32, #tpu.memory_space<vmem>>, vector<1x512xf32>,
    return
  }
  func.func @transform_0(%arg0: i32) -> (i32, i32) {
    %c0_i32 = arith.constant 0 : i32
    %c0_i32_0 = arith.constant 0 : i32
    return %c0_i32, %arg0 : i32, i32
  }
  func.func @transform_1(%arg0: i32) -> (i32, i32) {
    %c0_i32 = arith.constant 0 : i32
    %c0_i32_0 = arith.constant 0 : i32
    %c0_i32_1 = arith.constant 0 : i32
    return %c0_i32, %c0_i32_0 : i32, i32
  }
  func.func @transform_2(%arg0: i32) -> (i32, i32) {
    %c0_i32 = arith.constant 0 : i32
    %c0_i32_0 = arith.constant 0 : i32
    return %c0_i32, %arg0 : i32, i32
  }
}

</mosaic_0001>

<llo_original>
// kernel: tpu_custom_call.1
$region0: #{tpu_custom_call.1}
  #allocation0 [shape = 'u32[]', space=smem, size = 0x4, offset = 0x4, fixed_abs, tag = 'smem constant byte address 0x4 - core index']
  #allocation1 [shape = 'u32[144,128]{1,0:T(1,128)}', space=vmem, size = 0x12000, scoped, tag = 'internal scratch']
  %s0 = inlined_call_operand.hbm [shape: f32[14,1024], index: 0, kind: input, shape index: {}]
  %s1 = inlined_call_operand.vmem [shape: f32[24,14], index: 1, kind: input, shape index: {}]
  %s2 = inlined_call_operand.hbm [shape: f32[1,1024], index: 2, kind: output, shape index: {}]
  %s3 = sld [smem:[#allocation0]]
  $region45: #{tpu_custom_call.1} parent=0
    _
  %s5 = ssub.s32 1, %s3
  %s6 = scalar_select 0, %s5, %s3
  $region1: #{tpu_custom_call.1} parent=0
    #allocation2 [shape = 'u8[65536]{0}', space=vmem, size = 0x10000, scoped, tag = 'input window, operand 0']
    #allocation3 [shape = 's32[2]{0}', space=sflag, size = 0x8, scoped, tag = 'scoped memory for tpu_custom_call.1']
    #allocation4 [shape = 's32[2]{0}', space=sflag, size = 0x8, scoped, tag = 'scoped memory for tpu_custom_call.1']
    #allocation5 [shape = 'u8[4096]{0}', space=vmem, size = 0x1000, scoped, tag = 'output window, operand 0']
    %7 = vsyncpa [#allocation3], 0
    %s8 = scalar_lea.sflag [#allocation3], 1
    %9 = vsyncpa %s8, 0
    %10 = vsyncpa [#allocation4], 0
    %s11 = scalar_lea.sflag [#allocation4], 1
    %12 = vsyncpa %s11, 0
    loop: start=0, step=1, limit=4
    $region2: #{tpu_custom_call.1} parent=1 // loop_pre_header
      _
    $region3: #{tpu_custom_call.1} parent=1 // loop_header
      %s14 = sphi 0, %s18
      %p15 = scmp.ge.s32.totalorder %s14, 4
      %s24 = sphi 0, %s26
      %s27 = sphi 0, %s24
      %s28 = sphi 0, %s27
      %s44 = sphi 0, %s28
      %s48 = sphi 0, %s48
      %s50 = sphi 0, %s48
      %s51 = sphi 0, %s50
      %s65 = sphi 0, %s51
      %s71 = sphi 0, %s73
      %s74 = sphi 0, %s71
      %s75 = sphi 0, %s74
      %s91 = sphi 0, %s75
    $region4: #{tpu_custom_call.1} parent=1 // loop_header_branch
      %17 = sbr.rel (%p15) target = $region8
    $region5: #{tpu_custom_call.1} parent=1 // loop_body
      %s19 = ssub.s32 %s14, 1
      %s20 = ssub.s32 %s14, 2
      %s21 = sadd.s32 %s14, 1
      %s22 = ssub.s32 %s14, %s21
      %p23 = scmp.eq.s32.totalorder %s22, 0
      %s25 = sadd.s32 %s24, 1
      %s26 = scalar_select %p23, %s24, %s25
      %p29 = pneg %p23
      %p30 = scmp.eq.s32.totalorder %s14, 1
      %p31 = por %p29, %p30
      %p32 = scmp.ne.s32.totalorder %s24, %s27
      %p33 = scmp.eq.s32.totalorder %s14, 0
      %p34 = por %p32, %p33
      %p35 = scmp.ne.s32.totalorder %s24, %s27
      %p36 = scmp.eq.s32.totalorder %s19, 1
      %p37 = por %p35, %p36
      %p38 = scmp.ne.s32.totalorder %s27, %s28
      %p39 = scmp.eq.s32.totalorder %s19, 0
      %p40 = por %p38, %p39
      %p41 = scmp.ne.s32.totalorder %s27, %s28
      %p42 = scmp.eq.s32.totalorder %s20, 1
      %p43 = por %p41, %p42
      %p45 = scmp.ne.s32.totalorder %s28, %s44
      %p46 = scmp.eq.s32.totalorder %s20, 0
      %p47 = por %p45, %p46
      %s49 = sadd.s32 %s48, 1
      %p52 = scmp.eq.s32.totalorder %s14, 1
      %p53 = scmp.ne.s32.totalorder %s48, %s50
      %p54 = scmp.eq.s32.totalorder %s14, 0
      %p55 = por %p53, %p54
      %p56 = scmp.ne.s32.totalorder %s48, %s50
      %p57 = scmp.eq.s32.totalorder %s19, 1
      %p58 = por %p56, %p57
      %p59 = scmp.ne.s32.totalorder %s50, %s51
      %p60 = scmp.eq.s32.totalorder %s19, 0
      %p61 = por %p59, %p60
      %p62 = scmp.ne.s32.totalorder %s50, %s51
      %p63 = scmp.eq.s32.totalorder %s20, 1
      %p64 = por %p62, %p63
      %p66 = scmp.ne.s32.totalorder %s51, %s65
      %p67 = scmp.eq.s32.totalorder %s20, 0
      %p68 = por %p66, %p67
      %s69 = ssub.s32 %s14, %s21
      %p70 = scmp.eq.s32.totalorder %s69, 0
      %s72 = sadd.s32 %s71, 1
      %s73 = scalar_select %p70, %s71, %s72
      %p76 = pneg %p70
      %p77 = scmp.eq.s32.totalorder %s14, 1
      %p78 = por %p76, %p77
      %p79 = scmp.ne.s32.totalorder %s71, %s74
      %p80 = scmp.eq.s32.totalorder %s14, 0
      %p81 = por %p79, %p80
      %p82 = scmp.ne.s32.totalorder %s71, %s74
      %p83 = scmp.eq.s32.totalorder %s19, 1
      %p84 = por %p82, %p83
      %p85 = scmp.ne.s32.totalorder %s74, %s75
      %p86 = scmp.eq.s32.totalorder %s19, 0
      %p87 = por %p85, %p86
      %p88 = scmp.ne.s32.totalorder %s74, %s75
      %p89 = scmp.eq.s32.totalorder %s20, 1
      %p90 = por %p88, %p89
      %p92 = scmp.ne.s32.totalorder %s75, %s91
      %p93 = scmp.eq.s32.totalorder %s20, 0
      %p94 = por %p92, %p93
      %p95 = scmp.le.s32.totalorder 1, %s14
      %p96 = scmp.lt.s32.totalorder %s14, 3
      %p97 = pnand %p95, %p96
      %p98 = pneg %p97
      // Predicated region
      $region9: #{tpu_custom_call.1} parent=5 // pred_check
        _
      $region10: #{tpu_custom_call.1} parent=5 // pred_check_branch
        %100 = sbr.rel (%p97) target = $region12
      $region11: #{tpu_custom_call.1} parent=5 // pred_region
        %s101 = ssub.s32 %s14, 1
        // Predicated region
        $region13: #{tpu_custom_call.1} parent=11 // pred_check
          %p102 = pneg %p61
        $region14: #{tpu_custom_call.1} parent=11 // pred_check_branch
          %104 = sbr.rel (%p102) target = $region16
        $region15: #{tpu_custom_call.1} parent=11 // pred_region
          _
        $region16: #{tpu_custom_call.1} parent=11 // pred_fallthru
          _
      $region12: #{tpu_custom_call.1} parent=5 // pred_fallthru
        _
      %p105 = scmp.lt.s32.totalorder %s14, 2
      // Predicated region
      $region17: #{tpu_custom_call.1} parent=5 // pred_check
        %p106 = pneg %p105
      $region18: #{tpu_custom_call.1} parent=5 // pred_check_branch
        %108 = sbr.rel (%p106) target = $region20
      $region19: #{tpu_custom_call.1} parent=5 // pred_region
        // Predicated region
        $region21: #{tpu_custom_call.1} parent=19 // pred_check
          %p109 = pneg %p34
        $region22: #{tpu_custom_call.1} parent=19 // pred_check_branch
          %111 = sbr.rel (%p109) target = $region24
        $region23: #{tpu_custom_call.1} parent=19 // pred_region
          %s112 = sand.u32 %s24, 1
          %s113 = scalar_lea.sflag [#allocation3], %s112
          %s114 = sand.u32 %s24, 1
          %s115 = smul.addr %s114, 64
          %s116 = scalar_lea.vmem [#allocation2], %s115
          %s117 = smul.u32 4, %s14
          %s119 = ssub.s32 1024, 1024
          %120 = vsyncadd %s113, %s119
          %s121 = smul.addr %s117, 128
          %s122 = scalar_lea.hbm %s0, %s121
          %s123 = sshll.u32 %s116, 4
          %s124 = int_to_ptr.vmem [resolvable:$true] %s123
          %129 = dma.hbm_to_vmem [thread:$0]  %s122, 1024, %s124, %s113, 1024, 512, 32
        $region24: #{tpu_custom_call.1} parent=19 // pred_fallthru
          _
      $region20: #{tpu_custom_call.1} parent=5 // pred_fallthru
        _
      %p130 = scmp.le.s32.totalorder 1, %s14
      %p131 = scmp.lt.s32.totalorder %s14, 3
      %p132 = pnand %p130, %p131
      %p133 = pneg %p132
      // Predicated region
      $region25: #{tpu_custom_call.1} parent=5 // pred_check
        _
      $region26: #{tpu_custom_call.1} parent=5 // pred_check_branch
        %135 = sbr.rel (%p132) target = $region28
      $region27: #{tpu_custom_call.1} parent=5 // pred_region
        %s136 = ssub.s32 %s14, 1
        %s137 = sand.u32 %s27, 1
        %s138 = scalar_lea.sflag [#allocation3], %s137
        %s139 = sand.u32 %s27, 1
        %s140 = smul.addr %s139, 64
        %s141 = scalar_lea.vmem [#allocation2], %s140
        // Predicated region
        $region29: #{tpu_custom_call.1} parent=27 // pred_check
          %p142 = pneg %p40
        $region30: #{tpu_custom_call.1} parent=27 // pred_check_branch
          %144 = sbr.rel (%p142) target = $region32
        $region31: #{tpu_custom_call.1} parent=27 // pred_region
          %145 = dma.done %s138, 1024
        $region32: #{tpu_custom_call.1} parent=27 // pred_fallthru
          _
        %s146 = sand.u32 %s27, 1
        %s147 = scalar_lea.sflag [#allocation3], %s146
        %s148 = sand.u32 %s27, 1
        %s149 = smul.addr %s148, 64
        %s150 = scalar_lea.vmem [#allocation2], %s149
        %p151 = pneg %p40
        %p152 = pneg %p37
        %p153 = pneg %p61
        %p154 = pneg %p58
        %p155 = pneg %p87
        %p156 = pneg %p84
        %s157 = sand.u32 %s74, 1
        %s158 = scalar_lea.sflag [#allocation4], %s157
        %s159 = sand.u32 %s74, 1
        %s160 = smul.addr %s159, 4
        %s161 = scalar_lea.vmem [#allocation5], %s160
        %s162 = smul.u32 4, %s19
        %s163 = smul.u32 4, %s19
        %v164 = vld [vmem:[%s141] sm:$0xff]
        %v165 = vld [vmem:[%s141 + $0x8] sm:$0xff]
        %v166 = vld [vmem:[%s141 + $0x10] sm:$0xff]
        %v167 = vld [vmem:[%s141 + $0x18] sm:$0xff]
        %v168 = vld [vmem:[%s141 + $0x20] sm:$0x3f]
        %v169 = vld [vmem:[%s141 + $0x28] sm:$0x3f]
        %v170 = vld [vmem:[%s141 + $0x30] sm:$0x3f]
        %v171 = vld [vmem:[%s141 + $0x38] sm:$0x3f]
        %v172 = vld [vmem:[%s1] sm:$0x3f]
        %vm173 = vcmask 113664
        %v175 = vsel %vm173, %v172, 0
        %vm177 = vcmask 1045504
        %v179 = vsel %vm177, %v168, 0
        %v182 = vsel %vm177, %v169, 0
        %v185 = vsel %vm177, %v170, 0
        %v188 = vsel %vm177, %v171, 0
        %190 = vmatprep.subr.mxu0 %v165
        %191 = vmatpush1.msra.mxu0 %v164
        %192 = vmatprep.subr.mxu0 %v182
        %193 = vmatpush1.msra.mxu0 %v179
        %194 = vmatprep.subr.mxu0 0.0
        %195 = vmatpush1.msra.mxu0 0.0
        %196 = vmatprep.subr.mxu0 0.0
        %197 = vmatpush1.msra.mxu0 0.0
        %198 = vmatprep.subr.mxu0 0.0
        %199 = vmatpush1.msra.mxu0 0.0
        %200 = vmatprep.subr.mxu0 0.0
        %201 = vmatpush1.msra.mxu0 0.0
        %202 = vmatprep.subr.mxu0 0.0
        %203 = vmatpush1.msra.mxu0 0.0
        %204 = vmatprep.subr.mxu0 0.0
        %205 = vmatpush1.msra.mxu0 0.0
        %206 = vmatprep.subr.mxu0 0.0
        %207 = vmatpush1.msra.mxu0 0.0
        %208 = vmatprep.subr.mxu0 0.0
        %209 = vmatpush1.msra.mxu0 0.0
        %210 = vmatprep.subr.mxu0 0.0
        %211 = vmatpush1.msra.mxu0 0.0
        %212 = vmatprep.subr.mxu0 0.0
        %213 = vmatpush1.msra.mxu0 0.0
        %214 = vmatprep.subr.mxu0 0.0
        %215 = vmatpush1.msra.mxu0 0.0
        %216 = vmatprep.subr.mxu0 0.0
        %217 = vmatpush1.msra.mxu0 0.0
        %218 = vmatprep.subr.mxu0 0.0
        %219 = vmatpush1.msra.mxu0 0.0
        %220 = vmatprep.subr.mxu0 0.0
        %221 = vmatpush1.msra.mxu0 0.0
        %222 = vmatprep.subr.mxu0 0.0
        %223 = vmatpush1.msra.mxu0 0.0
        %224 = vmatprep.subr.mxu0 0.0
        %225 = vmatpush1.msra.mxu0 0.0
        %226 = vmatprep.subr.mxu0 0.0
        %227 = vmatpush1.msra.mxu0 0.0
        %228 = vmatprep.subr.mxu0 0.0
        %229 = vmatpush1.msra.mxu0 0.0
        %230 = vmatprep.subr.mxu0 0.0
        %231 = vmatpush1.msra.mxu0 0.0
        %232 = vmatprep.subr.mxu0 0.0
        %233 = vmatpush1.msra.mxu0 0.0
        %234 = vmatprep.subr.mxu0 0.0
        %235 = vmatpush1.msra.mxu0 0.0
        %236 = vmatprep.subr.mxu0 0.0
        %237 = vmatpush1.msra.mxu0 0.0
        %238 = vmatprep.subr.mxu0 0.0
        %239 = vmatpush1.msra.mxu0 0.0
        %240 = vmatprep.subr.mxu0 0.0
        %241 = vmatpush1.msra.mxu0 0.0
        %242 = vmatprep.subr.mxu0 0.0
        %243 = vmatpush1.msra.mxu0 0.0
        %244 = vmatprep.subr.mxu0 0.0
        %245 = vmatpush1.msra.mxu0 0.0
        %246 = vmatprep.subr.mxu0 0.0
        %247 = vmatpush1.msra.mxu0 0.0
        %248 = vmatprep.subr.mxu0 0.0
        %249 = vmatpush1.msra.mxu0 0.0
        %250 = vmatprep.subr.mxu0 0.0
        %251 = vmatpush1.msra.mxu0 0.0
        %252 = vmatprep.subr.mxu0 0.0
        %253 = vmatpush1.msra.mxu0 0.0
        %254 = vmatprep.mubr.f32.mxu0 0.0
        %255 = vmatmul.mubr.f32.gmra.mrb[0].mxu0 %v175
        %v256 = vpop.f32.mrb[0].mxu0
        %v257 = vadd.f32 0.0, %v256
        %v258 = vpop.f32.mrb[0].mxu0
        %v259 = vadd.f32 0.0, %v258
        %260 = vdwg.mxu0
        %261 = vmatprep.subr.mxu0 %v167
        %262 = vmatpush1.msra.mxu0 %v166
        %263 = vmatprep.subr.mxu0 %v188
        %264 = vmatpush1.msra.mxu0 %v185
        %265 = vmatprep.subr.mxu0 0.0
        %266 = vmatpush1.msra.mxu0 0.0
        %267 = vmatprep.subr.mxu0 0.0
        %268 = vmatpush1.msra.mxu0 0.0
        %269 = vmatprep.subr.mxu0 0.0
        %270 = vmatpush1.msra.mxu0 0.0
        %271 = vmatprep.subr.mxu0 0.0
        %272 = vmatpush1.msra.mxu0 0.0
        %273 = vmatprep.subr.mxu0 0.0
        %274 = vmatpush1.msra.mxu0 0.0
        %275 = vmatprep.subr.mxu0 0.0
        %276 = vmatpush1.msra.mxu0 0.0
        %277 = vmatprep.subr.mxu0 0.0
        %278 = vmatpush1.msra.mxu0 0.0
        %279 = vmatprep.subr.mxu0 0.0
        %280 = vmatpush1.msra.mxu0 0.0
        %281 = vmatprep.subr.mxu0 0.0
        %282 = vmatpush1.msra.mxu0 0.0
        %283 = vmatprep.subr.mxu0 0.0
        %284 = vmatpush1.msra.mxu0 0.0
        %285 = vmatprep.subr.mxu0 0.0
        %286 = vmatpush1.msra.mxu0 0.0
        %287 = vmatprep.subr.mxu0 0.0
        %288 = vmatpush1.msra.mxu0 0.0
        %289 = vmatprep.subr.mxu0 0.0
        %290 = vmatpush1.msra.mxu0 0.0
        %291 = vmatprep.subr.mxu0 0.0
        %292 = vmatpush1.msra.mxu0 0.0
        %293 = vmatprep.subr.mxu0 0.0
        %294 = vmatpush1.msra.mxu0 0.0
        %295 = vmatprep.subr.mxu0 0.0
        %296 = vmatpush1.msra.mxu0 0.0
        %297 = vmatprep.subr.mxu0 0.0
        %298 = vmatpush1.msra.mxu0 0.0
        %299 = vmatprep.subr.mxu0 0.0
        %300 = vmatpush1.msra.mxu0 0.0
        %301 = vmatprep.subr.mxu0 0.0
        %302 = vmatpush1.msra.mxu0 0.0
        %303 = vmatprep.subr.mxu0 0.0
        %304 = vmatpush1.msra.mxu0 0.0
        %305 = vmatprep.subr.mxu0 0.0
        %306 = vmatpush1.msra.mxu0 0.0
        %307 = vmatprep.subr.mxu0 0.0
        %308 = vmatpush1.msra.mxu0 0.0
        %309 = vmatprep.subr.mxu0 0.0
        %310 = vmatpush1.msra.mxu0 0.0
        %311 = vmatprep.subr.mxu0 0.0
        %312 = vmatpush1.msra.mxu0 0.0
        %313 = vmatprep.subr.mxu0 0.0
        %314 = vmatpush1.msra.mxu0 0.0
        %315 = vmatprep.subr.mxu0 0.0
        %316 = vmatpush1.msra.mxu0 0.0
        %317 = vmatprep.subr.mxu0 0.0
        %318 = vmatpush1.msra.mxu0 0.0
        %319 = vmatprep.subr.mxu0 0.0
        %320 = vmatpush1.msra.mxu0 0.0
        %321 = vmatprep.subr.mxu0 0.0
        %322 = vmatpush1.msra.mxu0 0.0
        %323 = vmatprep.subr.mxu0 0.0
        %324 = vmatpush1.msra.mxu0 0.0
        %325 = vmatprep.mubr.f32.mxu0 0.0
        %326 = vmatmul.mubr.f32.gmra.mrb[0].mxu0 %v175
        %v327 = vpop.f32.mrb[0].mxu0
        %v328 = vadd.f32 0.0, %v327
        %v329 = vpop.f32.mrb[0].mxu0
        %v330 = vadd.f32 0.0, %v329
        %331 = vdwg.mxu0
        %v332 = vlaneseq
        %v333 = vshrl.u32 %v332, 7
        %v338 = vrot.slane %v257, 1
        %v339 = vrot.slane %v259, 1
        %v340 = vrot.slane %v328, 1
        %v341 = vrot.slane %v330, 1
        %v346 = vmul.f32 %v257, %v338
        %v347 = vmul.f32 %v259, %v339
        %v348 = vmul.f32 %v328, %v340
        %v349 = vmul.f32 %v330, %v341
        %vm350 = vcmp.eq.s32.totalorder %v333, 1
        %v351 = vmul.f32 %v257, %v257
        %v352 = vmul.f32 %v259, %v259
        %v353 = vmul.f32 %v328, %v328
        %v354 = vmul.f32 %v330, %v330
        %v355 = vsel %vm350, %v351, %v257
        %v356 = vsel %vm350, %v352, %v259
        %v357 = vsel %vm350, %v353, %v328
        %v358 = vsel %vm350, %v354, %v330
        %vm359 = vcmp.eq.s32.totalorder %v333, 2
        %v360 = vtanh.pop %v257
        %v361 = vtanh.pop %v259
        %v362 = vtanh.pop %v328
        %v363 = vtanh.pop %v330
        %v364 = vsel %vm359, %v360, %v355
        %v365 = vsel %vm359, %v361, %v356
        %v366 = vsel %vm359, %v362, %v357
        %v367 = vsel %vm359, %v363, %v358
        %vm368 = vcmp.eq.s32.totalorder %v333, 3
        %v369 = vxor.u32 %v257, 2147483648
        %v370 = vxor.u32 %v259, 2147483648
        %v371 = vxor.u32 %v328, 2147483648
        %v372 = vxor.u32 %v330, 2147483648
        %v373 = vmul.f32 %v369, 1.442695
        %v374 = vpow.pop %v373
        %v375 = vmul.f32 %v370, 1.442695
        %v376 = vpow.pop %v375
        %v377 = vmul.f32 %v371, 1.442695
        %v378 = vpow.pop %v377
        %v379 = vmul.f32 %v372, 1.442695
        %v380 = vpow.pop %v379
        %v381 = vadd.f32 %v374, 1.0
        %v382 = vadd.f32 %v376, 1.0
        %v383 = vadd.f32 %v378, 1.0
        %v384 = vadd.f32 %v380, 1.0
        %v385 = vrcp.pop %v381
        %v386 = vmul.f32 1.0, %v385
        %v387 = vrcp.pop %v382
        %v388 = vmul.f32 1.0, %v387
        %v389 = vrcp.pop %v383
        %v390 = vmul.f32 1.0, %v389
        %v391 = vrcp.pop %v384
        %v392 = vmul.f32 1.0, %v391
        %v393 = vsel %vm368, %v386, %v364
        %v394 = vsel %vm368, %v388, %v365
        %v395 = vsel %vm368, %v390, %v366
        %v396 = vsel %vm368, %v392, %v367
        %vm397 = vcmp.eq.s32.totalorder %v333, 4
        %v398 = vlaneseq
        %v399 = vshrl.u32 %v398, 7
        %v400 = vsub.s32 4, %v399
        %v401 = vrot.slane %v346, %v400
        %v402 = vlaneseq
        %v403 = vshrl.u32 %v402, 7
        %v404 = vsub.s32 4, %v403
        %v405 = vrot.slane %v347, %v404
        %v406 = vlaneseq
        %v407 = vshrl.u32 %v406, 7
        %v408 = vsub.s32 4, %v407
        %v409 = vrot.slane %v348, %v408
        %v410 = vlaneseq
        %v411 = vshrl.u32 %v410, 7
        %v412 = vsub.s32 4, %v411
        %v413 = vrot.slane %v349, %v412
        %v414 = vsel %vm397, %v401, %v393
        %v415 = vsel %vm397, %v405, %v394
        %v416 = vsel %vm397, %v409, %v395
        %v417 = vsel %vm397, %v413, %v396
        %v418 = vld [vmem:[%s1 + $0x8] sm:$0x3f]
        %vm419 = vcmask 39936
        %v421 = vsel %vm419, %v418, 0
        %vm423 = vcmask 1044480
        %v425 = vsel %vm423, %v414, 0
        %v428 = vsel %vm423, %v415, 0
        %v431 = vsel %vm423, %v416, 0
        %v434 = vsel %vm423, %v417, 0
        %436 = vmatprep.subr.mxu0 %v428
        %437 = vmatpush1.msra.mxu0 %v425
        %438 = vmatprep.subr.mxu0 0.0
        %439 = vmatpush1.msra.mxu0 0.0
        %440 = vmatprep.subr.mxu0 0.0
        %441 = vmatpush1.msra.mxu0 0.0
        %442 = vmatprep.subr.mxu0 0.0
        %443 = vmatpush1.msra.mxu0 0.0
        %444 = vmatprep.subr.mxu0 0.0
        %445 = vmatpush1.msra.mxu0 0.0
        %446 = vmatprep.subr.mxu0 0.0
        %447 = vmatpush1.msra.mxu0 0.0
        %448 = vmatprep.subr.mxu0 0.0
        %449 = vmatpush1.msra.mxu0 0.0
        %450 = vmatprep.subr.mxu0 0.0
        %451 = vmatpush1.msra.mxu0 0.0
        %452 = vmatprep.subr.mxu0 0.0
        %453 = vmatpush1.msra.mxu0 0.0
        %454 = vmatprep.subr.mxu0 0.0
        %455 = vmatpush1.msra.mxu0 0.0
        %456 = vmatprep.subr.mxu0 0.0
        %457 = vmatpush1.msra.mxu0 0.0
        %458 = vmatprep.subr.mxu0 0.0
        %459 = vmatpush1.msra.mxu0 0.0
        %460 = vmatprep.subr.mxu0 0.0
        %461 = vmatpush1.msra.mxu0 0.0
        %462 = vmatprep.subr.mxu0 0.0
        %463 = vmatpush1.msra.mxu0 0.0
        %464 = vmatprep.subr.mxu0 0.0
        %465 = vmatpush1.msra.mxu0 0.0
        %466 = vmatprep.subr.mxu0 0.0
        %467 = vmatpush1.msra.mxu0 0.0
        %468 = vmatprep.subr.mxu0 0.0
        %469 = vmatpush1.msra.mxu0 0.0
        %470 = vmatprep.subr.mxu0 0.0
        %471 = vmatpush1.msra.mxu0 0.0
        %472 = vmatprep.subr.mxu0 0.0
        %473 = vmatpush1.msra.mxu0 0.0
        %474 = vmatprep.subr.mxu0 0.0
        %475 = vmatpush1.msra.mxu0 0.0
        %476 = vmatprep.subr.mxu0 0.0
        %477 = vmatpush1.msra.mxu0 0.0
        %478 = vmatprep.subr.mxu0 0.0
        %479 = vmatpush1.msra.mxu0 0.0
        %480 = vmatprep.subr.mxu0 0.0
        %481 = vmatpush1.msra.mxu0 0.0
        %482 = vmatprep.subr.mxu0 0.0
        %483 = vmatpush1.msra.mxu0 0.0
        %484 = vmatprep.subr.mxu0 0.0
        %485 = vmatpush1.msra.mxu0 0.0
        %486 = vmatprep.subr.mxu0 0.0
        %487 = vmatpush1.msra.mxu0 0.0
        %488 = vmatprep.subr.mxu0 0.0
        %489 = vmatpush1.msra.mxu0 0.0
        %490 = vmatprep.subr.mxu0 0.0
        %491 = vmatpush1.msra.mxu0 0.0
        %492 = vmatprep.subr.mxu0 0.0
        %493 = vmatpush1.msra.mxu0 0.0
        %494 = vmatprep.subr.mxu0 0.0
        %495 = vmatpush1.msra.mxu0 0.0
        %496 = vmatprep.subr.mxu0 0.0
        %497 = vmatpush1.msra.mxu0 0.0
        %498 = vmatprep.subr.mxu0 0.0
        %499 = vmatpush1.msra.mxu0 0.0
        %500 = vmatprep.mubr.f32.mxu0 0.0
        %501 = vmatmul.mubr.f32.gmra.mrb[0].mxu0 %v421
        %v502 = vpop.f32.mrb[0].mxu0
        %v503 = vadd.f32 0.0, %v502
        %v504 = vpop.f32.mrb[0].mxu0
        %v505 = vadd.f32 0.0, %v504
        %506 = vdwg.mxu0
        %507 = vmatprep.subr.mxu0 %v434
        %508 = vmatpush1.msra.mxu0 %v431
        %509 = vmatprep.subr.mxu0 0.0
        %510 = vmatpush1.msra.mxu0 0.0
        %511 = vmatprep.subr.mxu0 0.0
        %512 = vmatpush1.msra.mxu0 0.0
        %513 = vmatprep.subr.mxu0 0.0
        %514 = vmatpush1.msra.mxu0 0.0
        %515 = vmatprep.subr.mxu0 0.0
        %516 = vmatpush1.msra.mxu0 0.0
        %517 = vmatprep.subr.mxu0 0.0
        %518 = vmatpush1.msra.mxu0 0.0
        %519 = vmatprep.subr.mxu0 0.0
        %520 = vmatpush1.msra.mxu0 0.0
        %521 = vmatprep.subr.mxu0 0.0
        %522 = vmatpush1.msra.mxu0 0.0
        %523 = vmatprep.subr.mxu0 0.0
        %524 = vmatpush1.msra.mxu0 0.0
        %525 = vmatprep.subr.mxu0 0.0
        %526 = vmatpush1.msra.mxu0 0.0
        %527 = vmatprep.subr.mxu0 0.0
        %528 = vmatpush1.msra.mxu0 0.0
        %529 = vmatprep.subr.mxu0 0.0
        %530 = vmatpush1.msra.mxu0 0.0
        %531 = vmatprep.subr.mxu0 0.0
        %532 = vmatpush1.msra.mxu0 0.0
        %533 = vmatprep.subr.mxu0 0.0
        %534 = vmatpush1.msra.mxu0 0.0
        %535 = vmatprep.subr.mxu0 0.0
        %536 = vmatpush1.msra.mxu0 0.0
        %537 = vmatprep.subr.mxu0 0.0
        %538 = vmatpush1.msra.mxu0 0.0
        %539 = vmatprep.subr.mxu0 0.0
        %540 = vmatpush1.msra.mxu0 0.0
        %541 = vmatprep.subr.mxu0 0.0
        %542 = vmatpush1.msra.mxu0 0.0
        %543 = vmatprep.subr.mxu0 0.0
        %544 = vmatpush1.msra.mxu0 0.0
        %545 = vmatprep.subr.mxu0 0.0
        %546 = vmatpush1.msra.mxu0 0.0
        %547 = vmatprep.subr.mxu0 0.0
        %548 = vmatpush1.msra.mxu0 0.0
        %549 = vmatprep.subr.mxu0 0.0
        %550 = vmatpush1.msra.mxu0 0.0
        %551 = vmatprep.subr.mxu0 0.0
        %552 = vmatpush1.msra.mxu0 0.0
        %553 = vmatprep.subr.mxu0 0.0
        %554 = vmatpush1.msra.mxu0 0.0
        %555 = vmatprep.subr.mxu0 0.0
        %556 = vmatpush1.msra.mxu0 0.0
        %557 = vmatprep.subr.mxu0 0.0
        %558 = vmatpush1.msra.mxu0 0.0
        %559 = vmatprep.subr.mxu0 0.0
        %560 = vmatpush1.msra.mxu0 0.0
        %561 = vmatprep.subr.mxu0 0.0
        %562 = vmatpush1.msra.mxu0 0.0
        %563 = vmatprep.subr.mxu0 0.0
        %564 = vmatpush1.msra.mxu0 0.0
        %565 = vmatprep.subr.mxu0 0.0
        %566 = vmatpush1.msra.mxu0 0.0
        %567 = vmatprep.subr.mxu0 0.0
        %568 = vmatpush1.msra.mxu0 0.0
        %569 = vmatprep.subr.mxu0 0.0
        %570 = vmatpush1.msra.mxu0 0.0
        %571 = vmatprep.mubr.f32.mxu0 0.0
        %572 = vmatmul.mubr.f32.gmra.mrb[0].mxu0 %v421
        %v573 = vpop.f32.mrb[0].mxu0
        %v574 = vadd.f32 0.0, %v573
        %v575 = vpop.f32.mrb[0].mxu0
        %v576 = vadd.f32 0.0, %v575
        %577 = vdwg.mxu0
        %v582 = vrot.slane %v503, 1
        %v583 = vrot.slane %v505, 1
        %v584 = vrot.slane %v574, 1
        %v585 = vrot.slane %v576, 1
        %v590 = vmul.f32 %v503, %v582
        %v591 = vmul.f32 %v505, %v583
        %v592 = vmul.f32 %v574, %v584
        %v593 = vmul.f32 %v576, %v585
        %v594 = vmul.f32 %v503, %v503
        %v595 = vmul.f32 %v505, %v505
        %v596 = vmul.f32 %v574, %v574
        %v597 = vmul.f32 %v576, %v576
        %v598 = vsel %vm350, %v594, %v503
        %v599 = vsel %vm350, %v595, %v505
        %v600 = vsel %vm350, %v596, %v574
        %v601 = vsel %vm350, %v597, %v576
        %v602 = vtanh.pop %v503
        %v603 = vtanh.pop %v505
        %v604 = vtanh.pop %v574
        %v605 = vtanh.pop %v576
        %v606 = vsel %vm359, %v602, %v598
        %v607 = vsel %vm359, %v603, %v599
        %v608 = vsel %vm359, %v604, %v600
        %v609 = vsel %vm359, %v605, %v601
        %v610 = vxor.u32 %v503, 2147483648
        %v611 = vxor.u32 %v505, 2147483648
        %v612 = vxor.u32 %v574, 2147483648
        %v613 = vxor.u32 %v576, 2147483648
        %v614 = vmul.f32 %v610, 1.442695
        %v615 = vpow.pop %v614
        %v616 = vmul.f32 %v611, 1.442695
        %v617 = vpow.pop %v616
        %v618 = vmul.f32 %v612, 1.442695
        %v619 = vpow.pop %v618
        %v620 = vmul.f32 %v613, 1.442695
        %v621 = vpow.pop %v620
        %v622 = vadd.f32 %v615, 1.0
        %v623 = vadd.f32 %v617, 1.0
        %v624 = vadd.f32 %v619, 1.0
        %v625 = vadd.f32 %v621, 1.0
        %v626 = vrcp.pop %v622
        %v627 = vmul.f32 1.0, %v626
        %v628 = vrcp.pop %v623
        %v629 = vmul.f32 1.0, %v628
        %v630 = vrcp.pop %v624
        %v631 = vmul.f32 1.0, %v630
        %v632 = vrcp.pop %v625
        %v633 = vmul.f32 1.0, %v632
        %v634 = vsel %vm368, %v627, %v606
        %v635 = vsel %vm368, %v629, %v607
        %v636 = vsel %vm368, %v631, %v608
        %v637 = vsel %vm368, %v633, %v609
        %v638 = vlaneseq
        %v639 = vshrl.u32 %v638, 7
        %v640 = vsub.s32 4, %v639
        %v641 = vrot.slane %v590, %v640
        %v642 = vlaneseq
        %v643 = vshrl.u32 %v642, 7
        %v644 = vsub.s32 4, %v643
        %v645 = vrot.slane %v591, %v644
        %v646 = vlaneseq
        %v647 = vshrl.u32 %v646, 7
        %v648 = vsub.s32 4, %v647
        %v649 = vrot.slane %v592, %v648
        %v650 = vlaneseq
        %v651 = vshrl.u32 %v650, 7
        %v652 = vsub.s32 4, %v651
        %v653 = vrot.slane %v593, %v652
        %v654 = vsel %vm397, %v641, %v634
        %v655 = vsel %vm397, %v645, %v635
        %v656 = vsel %vm397, %v649, %v636
        %v657 = vsel %vm397, %v653, %v637
        %v658 = vld [vmem:[%s1 + $0x10] sm:$0x1f]
        %660 = vset.pattern.permute.xlu0 0
        %661 = vperm.xlu0 %660, %v658
        %v662 = vpop.permute.xlu0 %661
        %v664 = vmul.f32 %v662, %v654
        %v665 = vmul.f32 %v662, %v655
        %v666 = vmul.f32 %v662, %v656
        %v667 = vmul.f32 %v662, %v657
        %v668 = vsel %vm423, %v664, 0.0
        %v669 = vrot.slane %v668, 4
        %v670 = vadd.f32 %v668, %v669
        %v671 = vrot.slane %v670, 2
        %v672 = vadd.f32 %v670, %v671
        %v673 = vrot.slane %v672, 1
        %v674 = vadd.f32 %v672, %v673
        %v675 = vsel %vm423, %v665, 0.0
        %v676 = vrot.slane %v675, 4
        %v677 = vadd.f32 %v675, %v676
        %v678 = vrot.slane %v677, 2
        %v679 = vadd.f32 %v677, %v678
        %v680 = vrot.slane %v679, 1
        %v681 = vadd.f32 %v679, %v680
        %v682 = vsel %vm423, %v666, 0.0
        %v683 = vrot.slane %v682, 4
        %v684 = vadd.f32 %v682, %v683
        %v685 = vrot.slane %v684, 2
        %v686 = vadd.f32 %v684, %v685
        %v687 = vrot.slane %v686, 1
        %v688 = vadd.f32 %v686, %v687
        %v689 = vsel %vm423, %v667, 0.0
        %v690 = vrot.slane %v689, 4
        %v691 = vadd.f32 %v689, %v690
        %v692 = vrot.slane %v691, 2
        %v693 = vadd.f32 %v691, %v692
        %v694 = vrot.slane %v693, 1
        %v695 = vadd.f32 %v693, %v694
        %v700 = vcombine.low %v674, %v681
        %v701 = vcombine.low %v688, %v695
        %v703 = vunpack.c.l.s4 1966171168
        %v704 = vunpack.c.0.s8 %v703
        %v705 = vlaneseq
        %v706 = vshrl.u32 %v705, 7
        %v707 = vsub.s32 %v704, %v706
        %v708 = vrot.slane %v700, %v707
        %v710 = vunpack.c.l.s4 1966171168
        %v711 = vunpack.c.0.s8 %v710
        %v712 = vlaneseq
        %v713 = vshrl.u32 %v712, 7
        %v714 = vsub.s32 %v711, %v713
        %v715 = vrot.slane %v701, %v714
        %v716 = vcombine.low %v708, %v715
        %v718 = vunpack.c.l.s4 1966171168
        %v719 = vunpack.c.0.s8 %v718
        %v720 = vlaneseq
        %v721 = vshrl.u32 %v720, 7
        %v722 = vsub.s32 %v719, %v721
        %v723 = vrot.slane %v716, %v722
        %v725 = vlaneseq
        %vm726 = vcmp.ge.s32.totalorder %v725, 0
        %vm727 = vcmp.lt.s32.totalorder %v725, 512
        %vm728 = vmand %vm726, %vm727
        %729 = vst.msk [vmem:[%s161] sm:$0xf] %vm728, %v723
        %s730 = sand.u32 %s74, 1
        %s731 = scalar_lea.sflag [#allocation4], %s730
        %s732 = sand.u32 %s74, 1
        %s733 = smul.addr %s732, 4
        %s734 = scalar_lea.vmem [#allocation5], %s733
        // Predicated region
        $region33: #{tpu_custom_call.1} parent=27 // pred_check
          %p735 = pneg %p84
        $region34: #{tpu_custom_call.1} parent=27 // pred_check_branch
          %737 = sbr.rel (%p735) target = $region36
        $region35: #{tpu_custom_call.1} parent=27 // pred_region
          %s738 = smul.u32 4, %s19
          %s740 = ssub.s32 64, 64
          %741 = vsyncadd %s731, %s740
          %s742 = smul.addr %s738, 16
          %s743 = scalar_lea.hbm %s2, %s742
          %s745 = sshll.u32 %s734, 4
          %s746 = int_to_ptr.vmem [resolvable:$true] %s745
          %748 = dma.vmem_to_hbm [thread:$0]  %s746, 64, %s743, %s731
        $region36: #{tpu_custom_call.1} parent=27 // pred_fallthru
          _
      $region28: #{tpu_custom_call.1} parent=5 // pred_fallthru
        _
      %p749 = scmp.le.s32.totalorder 2, %s14
      // Predicated region
      $region37: #{tpu_custom_call.1} parent=5 // pred_check
        %p750 = pneg %p749
      $region38: #{tpu_custom_call.1} parent=5 // pred_check_branch
        %752 = sbr.rel (%p750) target = $region40
      $region39: #{tpu_custom_call.1} parent=5 // pred_region
        %s753 = ssub.s32 %s14, 2
        // Predicated region
        $region41: #{tpu_custom_call.1} parent=39 // pred_check
          %p754 = pneg %p90
        $region42: #{tpu_custom_call.1} parent=39 // pred_check_branch
          %756 = sbr.rel (%p754) target = $region44
        $region43: #{tpu_custom_call.1} parent=39 // pred_region
          %s757 = sand.u32 %s75, 1
          %s758 = scalar_lea.sflag [#allocation4], %s757
          %s759 = sand.u32 %s75, 1
          %s760 = smul.addr %s759, 4
          %s761 = scalar_lea.vmem [#allocation5], %s760
          %762 = dma.done %s758, 64
        $region44: #{tpu_custom_call.1} parent=39 // pred_fallthru
          _
      $region40: #{tpu_custom_call.1} parent=5 // pred_fallthru
        _
    $region6: #{tpu_custom_call.1} parent=1 // loop_footer
      %s18 = sadd.s32 1, %s14
    $region7: #{tpu_custom_call.1} parent=1 // loop_footer_branch
      %13 = sbr.rel target = $region3
    $region8: #{tpu_custom_call.1} parent=1 // loop_exit
      _
    %763 = vsyncpa [#allocation3], 1
    %s764 = scalar_lea.sflag [#allocation3], 1
    %765 = vsyncpa %s764, 1
    %766 = vsyncpa [#allocation4], 1
    %s767 = scalar_lea.sflag [#allocation4], 1
    %768 = vsyncpa %s767, 1

</llo_original>
